<compile_context>
chip_gen: v7x
topology: tpu7x:2x2x1
jax: 0.10.0
libtpu: 0.0.40
codegen_flags: <defaults>
</compile_context>

<pallas_src>
import functools

import jax
import jax.numpy as jnp
from jax import lax
from jax.experimental import pallas as pl
from jax.experimental.pallas import tpu as pltpu


def _round_up(x, m):
    return ((x + m - 1) // m) * m


def _cdiv(a, b):
    return (a + b - 1) // b


def _sublane_multiple(dtype):
    """Minimum sublane multiple for the second-to-last tile dim."""
    itemsize = jnp.dtype(dtype).itemsize
    if itemsize >= 4:
        return 8
    if itemsize == 2:
        return 16
    return 32


def _vmem_budget_bytes():
    """Generation-aware VMEM budget for all live tiles."""
    cap = 64 * 1024 * 1024  # conservative default = v7x per-core VMEM
    try:
        info = pltpu.get_tpu_info()
        cap = int(getattr(info, "vmem_capacity_bytes", cap)) or cap
    except Exception:
        pass
    # ~70% of physical VMEM: ~45 MiB on v7x (64 MiB), ~90 MiB on v5e/v6e (128 MiB).
    return min(int(cap * 0.70), 100 * 1024 * 1024)


def _pick_tk(Kp, cap):
    """Largest multiple-of-128 divisor of Kp that is <= cap (Kp % 128 == 0)."""
    best = 128
    d = 128
    limit = min(Kp, max(cap, 128))
    while d <= limit:
        if Kp % d == 0:
            best = d
        d += 128
    return best


def _footprint_bytes(tm, tn, tk, Kp, xb, wb, ob, bb, w_bufs):
    """Estimated VMEM bytes for the live tiles of one grid step."""
    f = 2 * tm * tk * xb            # x tiles (double buffered)
    f += w_bufs * tn * tk * wb      # weight tiles
    f += 2 * tn * bb                # bias tiles (tiny)
    f += 2 * tm * tn * ob           # output tiles
    if Kp > tk:                     # multi-K reduction needs an f32 accumulator
        f += tm * tn * 4
    return f


def _mask_k(tile, valid_cols):
    """Zero columns >= valid_cols (K-overhang garbage) of a [rows, K] tile."""
    col = lax.broadcasted_iota(jnp.int32, tile.shape, 1)
    return jnp.where(col < valid_cols, tile, jnp.zeros_like(tile))


def _linear_kernel_single_k(x_ref, w_ref, b_ref, o_ref, *, k_rem):
    """Whole K in one tile: no accumulator scratch, write output directly."""
    x = x_ref[...]
    w = w_ref[...]
    if k_rem:  # K not a lane multiple: zero overhang of BOTH operands (0*0 == 0)
        x = _mask_k(x, k_rem)
        w = _mask_k(w, k_rem)
    # NT contraction: contract K (dim 1) of x with K (dim 1) of the [N, K]
    # weight tile.  MXU-native transposed-RHS matmul; no wrapper-side weight.T.
    acc = lax.dot_general(
        x, w,
        dimension_numbers=(((1,), (1,)), ((), ())),
        preferred_element_type=jnp.float32,
    )
    o_ref[...] = (acc + b_ref[...].astype(jnp.float32)).astype(o_ref.dtype)


def _linear_kernel_multi_k(x_ref, w_ref, b_ref, o_ref, acc_ref, *, k_rem):
    """One (tm, tn) output tile reduced over the (innermost) K grid axis."""
    k = pl.program_id(2)
    nk = pl.num_programs(2)

    @pl.when(k == 0)
    def _():
        acc_ref[...] = jnp.zeros_like(acc_ref)

    x = x_ref[...]
    w = w_ref[...]
    if k_rem:  # mask only the final (partial) K tile
        valid = jnp.where(k == nk - 1, k_rem, x.shape[1])
        x = _mask_k(x, valid)
        w = _mask_k(w, valid)

    acc_ref[...] += lax.dot_general(
        x, w,
        dimension_numbers=(((1,), (1,)), ((), ())),
        preferred_element_type=jnp.float32,
    )

    @pl.when(k == nk - 1)
    def _():
        o_ref[...] = (acc_ref[...] + b_ref[...].astype(jnp.float32)).astype(
            o_ref.dtype
        )


def _weight_block_spec(tn, tk, index_map, n_buffers):
    """Weight BlockSpec, optionally with a deeper pipeline (guarded fallback)."""
    if n_buffers != 2:
        try:
            return pl.BlockSpec((tn, tk), index_map,
                                pipeline_mode=pl.Buffered(n_buffers))
        except Exception:  # older JAX without pipeline_mode / Buffered
            pass
    return pl.BlockSpec((tn, tk), index_map)


@jax.jit
def linear_pallas(x, weight, bias):
    """y = x @ weight.T + bias   (PyTorch nn.Linear semantics).

    x:      [..., K]  (any leading batch dims, last dim = in_features)
    weight: [N, K]    (out_features, in_features) -- PyTorch layout
    bias:   [N]
    returns [..., N]
    """
    *lead, K = x.shape
    N, K2 = weight.shape
    assert K == K2 and bias.shape == (N,), "shape mismatch"
    assert K > 0 and N > 0, "degenerate Linear shape"

    x2d = x.reshape(-1, K)
    M = x2d.shape[0]
    if M == 0:
        return jnp.zeros((*lead, N), x.dtype)

    out_dtype = x.dtype
    xb = jnp.dtype(x.dtype).itemsize
    wb = jnp.dtype(weight.dtype).itemsize
    ob = jnp.dtype(out_dtype).itemsize
    bb = jnp.dtype(bias.dtype).itemsize

    sub = _sublane_multiple(x.dtype)
    budget = _vmem_budget_bytes()

    Kp = _round_up(K, 128)      # lane-rounded K (masked in-kernel, never padded)
    Np_r = _round_up(N, 128)
    Mp_r = _round_up(M, sub)

    # ---- Tile selection ----------------------------------------------------
    # M tile: whole activation resident for small M (decode / small batch) so
    # the weight streams from HBM exactly once; otherwise 512-row tiles.
    tm = Mp_r if Mp_r <= 512 else 512
    tn = min(512, Np_r)
    tk = _pick_tk(Kp, 2048)     # divisor of Kp -> at most 127 wasted K lanes

    Mi = _cdiv(M, tm)

    # Weight-resident path: if the full lane-rounded weight fits the budget,
    # make it a single block (constant index_map) so it is DMA'd exactly once.
    if Mi > 1 and _footprint_bytes(tm, Np_r, Kp, Kp, xb, wb, ob, bb, 2) <= budget:
        tn, tk = Np_r, Kp

    # v7x megacore: with a single M block, make sure the j axis has >= 2 blocks
    # so the 'parallel' grid split can occupy both TensorCores.
    if Mi == 1 and Np_r >= 256 and _cdiv(N, tn) < 2:
        tn = _round_up(_cdiv(Np_r, 2), 128)

    # Shrink-to-fit safety net (rarely triggers with the baseline tiles).
    while _footprint_bytes(tm, tn, tk, Kp, xb, wb, ob, bb, 2) > budget:
        if tk > 128:
            tk = _pick_tk(Kp, tk // 2)
        elif tn > 128:
            tn = max(128, _round_up(tn // 2, 128))
        elif tm > sub:
            tm = max(sub, _round_up(tm // 2, sub))
        else:
            break

    Mi, Nj, Kk = _cdiv(M, tm), _cdiv(N, tn), Kp // tk
    # Valid width of the final K tile (0 => no in-kernel masking compiled in).
    k_rem = 0 if K % 128 == 0 else K - (Kk - 1) * tk

    # Small-M weight streaming: deeper weight pipeline to hide DMA issue latency.
    w_bufs = 2
    if (Mi == 1 and Nj * Kk >= 3
            and _footprint_bytes(tm, tn, tk, Kp, xb, wb, ob, bb, 3) <= budget):
        w_bufs = 3

    fp = _footprint_bytes(tm, tn, tk, Kp, xb, wb, ob, bb, w_bufs)
    vmem_limit = int(min(budget, max(int(fp * 1.5), 32 * 1024 * 1024)))

    b2d = bias.reshape(1, N)
    multi_k = Kk > 1

    if multi_k:
        grid = (Mi, Nj, Kk)
        in_specs = [
            pl.BlockSpec((tm, tk), lambda i, j, k: (i, k)),            # x tile
            _weight_block_spec(tn, tk, lambda i, j, k: (j, k), w_bufs),  # w tile
            pl.BlockSpec((1, tn), lambda i, j, k: (0, j)),             # bias tile
        ]
        out_specs = pl.BlockSpec((tm, tn), lambda i, j, k: (i, j))
        scratch = [pltpu.VMEM((tm, tn), jnp.float32)]
        kernel = functools.partial(_linear_kernel_multi_k, k_rem=k_rem)
        dims = ("parallel", "parallel", "arbitrary")
    else:
        grid = (Mi, Nj)
        in_specs = [
            pl.BlockSpec((tm, tk), lambda i, j: (i, 0)),
            _weight_block_spec(tn, tk, lambda i, j: (j, 0), w_bufs),
            pl.BlockSpec((1, tn), lambda i, j: (0, j)),
        ]
        out_specs = pl.BlockSpec((tm, tn), lambda i, j: (i, j))
        scratch = []
        kernel = functools.partial(_linear_kernel_single_k, k_rem=k_rem)
        dims = ("parallel", "parallel")

    out = pl.pallas_call(
        kernel,
        out_shape=jax.ShapeDtypeStruct((M, N), out_dtype),
        grid_spec=pltpu.PrefetchScalarGridSpec(
            num_scalar_prefetch=0,
            grid=grid,
            in_specs=in_specs,
            out_specs=out_specs,
            scratch_shapes=scratch,
        ),
        compiler_params=pltpu.CompilerParams(
            dimension_semantics=dims,
            vmem_limit_bytes=vmem_limit,
        ),
    )(x2d, weight, b2d)

    return out.reshape(*lead, N)


if __name__ == "__main__":
    # Small shapes consistent with nn.Linear(in_features, out_features).
    batch, in_features, out_features = 16, 128, 256

    key = jax.random.PRNGKey(0)
    kx, kw, kb = jax.random.split(key, 3)

    # Deterministic parameter init (mimics PyTorch's U(-1/sqrt(in), 1/sqrt(in))).
    bound = 1.0 / jnp.sqrt(in_features)
    x = jax.random.normal(kx, (batch, in_features), dtype=jnp.float32)
    weight = jax.random.uniform(
        kw, (out_features, in_features), minval=-bound, maxval=bound,
        dtype=jnp.float32,
    )
    bias = jax.random.uniform(
        kb, (out_features,), minval=-bound, maxval=bound, dtype=jnp.float32
    )

    y = linear_pallas(x, weight, bias)
    jax.block_until_ready(y)
    y_ref = x @ weight.T + bias
    assert y.shape == (batch, out_features)
    assert jnp.allclose(y, y_ref, atol=1e-4, rtol=1e-4)

    # Ragged case: non-128-multiple K and N, extra leading batch dim
    # (exercises the in-kernel K-remainder mask and M/N boundary blocks).
    key2 = jax.random.PRNGKey(1)
    k2x, k2w, k2b = jax.random.split(key2, 3)
    in2, out2 = 96, 100
    x2 = jax.random.normal(k2x, (2, 5, in2), dtype=jnp.float32)
    w2 = jax.random.normal(k2w, (out2, in2), dtype=jnp.float32) * 0.05
    b2 = jax.random.normal(k2b, (out2,), dtype=jnp.float32) * 0.05
    y2 = linear_pallas(x2, w2, b2)
    jax.block_until_ready(y2)
    y2_ref = x2 @ w2.T + b2
    assert y2.shape == (2, 5, out2)
    assert jnp.allclose(y2, y2_ref, atol=1e-4, rtol=1e-4)

    print("KERNEL_OK")
</pallas_src>

<mosaic_0001>
module attributes {stable_mosaic.version = 11 : i64} {
  func.func @_linear_kernel_single_k(%arg0: i32, %arg1: i32, %arg2: memref<16x128xf32, #tpu.memory_space<vmem>>, %arg3: memref<128x128xf32, #tpu.memory_space<vmem>>, %arg4: memref<1x128xf32, #tpu.memory_space<vmem>>, %arg5: memref<16x128xf32, #tpu.memory_space<vmem>>) attributes {dimension_semantics = [#tpu.dimension_semantics<parallel>, #tpu.dimension_semantics<parallel>], iteration_bounds = array<i64: 1, 2>, scalar_prefetch = 0 : i64, scratch_operands = 0 : i64, tpu.core_type = #tpu.core_type<tc>, window_params = [{transform_indices = @transform_0, window_bounds = array<i64: 16, 128>}, {transform_indices = @transform_1, window_bounds = array<i64: 128, 128>}, {transform_indices = @transform_2, window_bounds = array<i64: 1, 128>}, {transform_indices = @transform_3, window_bounds = array<i64: 16, 128>}]} {
    %c0 = arith.constant 0 : index
    %c0_0 = arith.constant 0 : index
    %0 = vector.load %arg2[%c0, %c0_0] : memref<16x128xf32, #tpu.memory_space<vmem>>, vector<16x128xf32>
    %c0_1 = arith.constant 0 : index
    %c0_2 = arith.constant 0 : index
    %1 = vector.load %arg3[%c0_1, %c0_2] : memref<128x128xf32, #tpu.memory_space<vmem>>, vector<128x128xf32>
    %cst = arith.constant dense<0.000000e+00> : vector<16x128xf32>
    %2 = tpu.matmul %0, %1, %cst {dimension_numbers = #tpu.dot_dimension_numbers<[1], [1], [0], [0], [0, 0, 1, 0], [], []>} : vector<16x128xf32>, vector<128x128xf32>, vector<16x128xf32> -> vector<16x128xf32>
    %c0_3 = arith.constant 0 : index
    %c0_4 = arith.constant 0 : index
    %3 = vector.load %arg4[%c0_3, %c0_4] : memref<1x128xf32, #tpu.memory_space<vmem>>, vector<1x128xf32>
    %4 = vector.broadcast %3 : vector<1x128xf32> to vector<16x128xf32>
    %5 = arith.addf %2, %4 : vector<16x128xf32>
    %c0_5 = arith.constant 0 : index
    %c0_6 = arith.constant 0 : index
    %6 = vector.load %arg5[%c0_5, %c0_6] : memref<16x128xf32, #tpu.memory_space<vmem>>, vector<16x128xf32>
    tpu.vector_store %arg5[%c0_5, %c0_6], %5 {strides = array<i32>} : memref<16x128xf32, #tpu.memory_space<vmem>>, vector<16x128xf32>,
    return
  }
  func.func @transform_0(%arg0: i32, %arg1: i32) -> (i32, i32) {
    %c0_i32 = arith.constant 0 : i32
    %c0_i32_0 = arith.constant 0 : i32
    return %arg0, %c0_i32 : i32, i32
  }
  func.func @transform_1(%arg0: i32, %arg1: i32) -> (i32, i32) {
    %c0_i32 = arith.constant 0 : i32
    %c0_i32_0 = arith.constant 0 : i32
    return %arg1, %c0_i32 : i32, i32
  }
  func.func @transform_2(%arg0: i32, %arg1: i32) -> (i32, i32) {
    %c0_i32 = arith.constant 0 : i32
    %c0_i32_0 = arith.constant 0 : i32
    return %c0_i32, %arg1 : i32, i32
  }
  func.func @transform_3(%arg0: i32, %arg1: i32) -> (i32, i32) {
    %c0_i32 = arith.constant 0 : i32
    return %arg0, %arg1 : i32, i32
  }
}

</mosaic_0001>

<llo_original>
// kernel: linear_pallas.1
$region0: #{linear_pallas.1}
  #allocation0 [shape = 'u32[]', space=smem, size = 0x4, offset = 0x4, fixed_abs, tag = 'smem constant byte address 0x4 - core index']
  #allocation1 [shape = 'u32[144,128]{1,0:T(1,128)}', space=vmem, size = 0x12000, scoped, tag = 'internal scratch']
  %s0 = inlined_call_operand.hbm [shape: f32[16,128], index: 0, kind: input, shape index: {}]
  %s1 = inlined_call_operand.hbm [shape: f32[256,128], index: 1, kind: input, shape index: {}]
  %s2 = inlined_call_operand.vmem [shape: f32[1,256], index: 2, kind: input, shape index: {}]
  %s3 = inlined_call_operand.hbm [shape: f32[16,256], index: 3, kind: output, shape index: {}]
  %s4 = sld [smem:[#allocation0]]
  $region53: #{linear_pallas.1} parent=0
    _
  %s6 = ssub.s32 1, %s4
  %s7 = scalar_select 0, %s6, %s4
  $region1: #{linear_pallas.1} parent=0
    #allocation2 [shape = 'u8[8192]{0}', space=vmem, size = 0x2000, scoped, tag = 'input window, operand 0, single buffered']
    #allocation3 [shape = 's32[2]{0}', space=sflag, size = 0x8, scoped, tag = 'scoped memory for linear_pallas.1']
    #allocation4 [shape = 's32[2]{0}', space=sflag, size = 0x8, scoped, tag = 'scoped memory for linear_pallas.1']
    #allocation5 [shape = 'u8[131072]{0}', space=vmem, size = 0x20000, scoped, tag = 'input window, operand 1']
    #allocation6 [shape = 's32[2]{0}', space=sflag, size = 0x8, scoped, tag = 'scoped memory for linear_pallas.1']
    #allocation7 [shape = 'u8[16384]{0}', space=vmem, size = 0x4000, scoped, tag = 'output window, operand 0']
    %8 = vsyncpa [#allocation3], 0
    %9 = vsyncpa [#allocation6], 0
    %s10 = scalar_lea.sflag [#allocation6], 1
    %11 = vsyncpa %s10, 0
    %12 = vsyncpa [#allocation4], 0
    %s13 = scalar_lea.sflag [#allocation4], 1
    %14 = vsyncpa %s13, 0
    loop: start=0, step=1, limit=4
    $region2: #{linear_pallas.1} parent=1 // loop_pre_header
      _
    $region3: #{linear_pallas.1} parent=1 // loop_header
      %s16 = sphi 0, %s20
      %p17 = scmp.ge.s32.totalorder %s16, 4
      %s23 = sphi 0, %s35
      %s24 = sphi 0, %s31
      %s25 = sphi 0, %s23
      %s26 = sphi 0, %s24
      %s27 = sphi 0, %s25
      %s28 = sphi 0, %s26
      %s38 = sphi 0, %s40
      %s41 = sphi 0, %s38
      %s42 = sphi 0, %s41
      %s58 = sphi 0, %s42
      %s64 = sphi 0, %s66
      %s67 = sphi 0, %s64
      %s68 = sphi 0, %s67
      %s84 = sphi 0, %s68
      %s90 = sphi 0, %s92
      %s93 = sphi 0, %s90
      %s94 = sphi 0, %s93
      %s110 = sphi 0, %s94
      %s118 = sphi 0, %s120
      %s121 = sphi 0, %s118
      %s122 = sphi 0, %s121
      %s138 = sphi 0, %s122
    $region4: #{linear_pallas.1} parent=1 // loop_header_branch
      %19 = sbr.rel (%p17) target = $region8
    $region5: #{linear_pallas.1} parent=1 // loop_body
      %s21 = ssub.s32 %s16, 1
      %s22 = ssub.s32 %s16, 2
      %s29 = sadd.s32 1, %s24
      %p30 = scmp.ge.s32.totalorder %s29, 2
      %s31 = scalar_select %p30, 0, %s29
      %s32 = sadd.s32 1, %s23
      %s33 = scalar_select %p30, %s32, %s23
      %p34 = scmp.ge.s32.totalorder %s33, 1
      %s35 = scalar_select %p34, 0, %s33
      %s36 = ssub.s32 %s23, %s35
      %p37 = scmp.eq.s32.totalorder %s36, 0
      %s39 = sadd.s32 %s38, 1
      %s40 = scalar_select %p37, %s38, %s39
      %p43 = pneg %p37
      %p44 = scmp.eq.s32.totalorder %s16, 1
      %p45 = por %p43, %p44
      %p46 = scmp.ne.s32.totalorder %s38, %s41
      %p47 = scmp.eq.s32.totalorder %s16, 0
      %p48 = por %p46, %p47
      %p49 = scmp.ne.s32.totalorder %s38, %s41
      %p50 = scmp.eq.s32.totalorder %s21, 1
      %p51 = por %p49, %p50
      %p52 = scmp.ne.s32.totalorder %s41, %s42
      %p53 = scmp.eq.s32.totalorder %s21, 0
      %p54 = por %p52, %p53
      %p55 = scmp.ne.s32.totalorder %s41, %s42
      %p56 = scmp.eq.s32.totalorder %s22, 1
      %p57 = por %p55, %p56
      %p59 = scmp.ne.s32.totalorder %s42, %s58
      %p60 = scmp.eq.s32.totalorder %s22, 0
      %p61 = por %p59, %p60
      %s62 = ssub.s32 %s24, %s31
      %p63 = scmp.eq.s32.totalorder %s62, 0
      %s65 = sadd.s32 %s64, 1
      %s66 = scalar_select %p63, %s64, %s65
      %p69 = pneg %p63
      %p70 = scmp.eq.s32.totalorder %s16, 1
      %p71 = por %p69, %p70
      %p72 = scmp.ne.s32.totalorder %s64, %s67
      %p73 = scmp.eq.s32.totalorder %s16, 0
      %p74 = por %p72, %p73
      %p75 = scmp.ne.s32.totalorder %s64, %s67
      %p76 = scmp.eq.s32.totalorder %s21, 1
      %p77 = por %p75, %p76
      %p78 = scmp.ne.s32.totalorder %s67, %s68
      %p79 = scmp.eq.s32.totalorder %s21, 0
      %p80 = por %p78, %p79
      %p81 = scmp.ne.s32.totalorder %s67, %s68
      %p82 = scmp.eq.s32.totalorder %s22, 1
      %p83 = por %p81, %p82
      %p85 = scmp.ne.s32.totalorder %s68, %s84
      %p86 = scmp.eq.s32.totalorder %s22, 0
      %p87 = por %p85, %p86
      %s88 = ssub.s32 %s24, %s31
      %p89 = scmp.eq.s32.totalorder %s88, 0
      %s91 = sadd.s32 %s90, 1
      %s92 = scalar_select %p89, %s90, %s91
      %p95 = pneg %p89
      %p96 = scmp.eq.s32.totalorder %s16, 1
      %p97 = por %p95, %p96
      %p98 = scmp.ne.s32.totalorder %s90, %s93
      %p99 = scmp.eq.s32.totalorder %s16, 0
      %p100 = por %p98, %p99
      %p101 = scmp.ne.s32.totalorder %s90, %s93
      %p102 = scmp.eq.s32.totalorder %s21, 1
      %p103 = por %p101, %p102
      %p104 = scmp.ne.s32.totalorder %s93, %s94
      %p105 = scmp.eq.s32.totalorder %s21, 0
      %p106 = por %p104, %p105
      %p107 = scmp.ne.s32.totalorder %s93, %s94
      %p108 = scmp.eq.s32.totalorder %s22, 1
      %p109 = por %p107, %p108
      %p111 = scmp.ne.s32.totalorder %s94, %s110
      %p112 = scmp.eq.s32.totalorder %s22, 0
      %p113 = por %p111, %p112
      %s114 = ssub.s32 %s23, %s35
      %s115 = ssub.s32 %s24, %s31
      %s116 = sor.u32 %s114, %s115
      %p117 = scmp.eq.s32.totalorder %s116, 0
      %s119 = sadd.s32 %s118, 1
      %s120 = scalar_select %p117, %s118, %s119
      %p123 = pneg %p117
      %p124 = scmp.eq.s32.totalorder %s16, 1
      %p125 = por %p123, %p124
      %p126 = scmp.ne.s32.totalorder %s118, %s121
      %p127 = scmp.eq.s32.totalorder %s16, 0
      %p128 = por %p126, %p127
      %p129 = scmp.ne.s32.totalorder %s118, %s121
      %p130 = scmp.eq.s32.totalorder %s21, 1
      %p131 = por %p129, %p130
      %p132 = scmp.ne.s32.totalorder %s121, %s122
      %p133 = scmp.eq.s32.totalorder %s21, 0
      %p134 = por %p132, %p133
      %p135 = scmp.ne.s32.totalorder %s121, %s122
      %p136 = scmp.eq.s32.totalorder %s22, 1
      %p137 = por %p135, %p136
      %p139 = scmp.ne.s32.totalorder %s122, %s138
      %p140 = scmp.eq.s32.totalorder %s22, 0
      %p141 = por %p139, %p140
      %p142 = scmp.le.s32.totalorder 1, %s16
      %p143 = scmp.lt.s32.totalorder %s16, 3
      %p144 = pnand %p142, %p143
      %p145 = pneg %p144
      // Predicated region
      $region9: #{linear_pallas.1} parent=5 // pred_check
        _
      $region10: #{linear_pallas.1} parent=5 // pred_check_branch
        %147 = sbr.rel (%p144) target = $region12
      $region11: #{linear_pallas.1} parent=5 // pred_region
        %s148 = ssub.s32 %s16, 1
        // Predicated region
        $region13: #{linear_pallas.1} parent=11 // pred_check
          %p149 = pneg %p54
        $region14: #{linear_pallas.1} parent=11 // pred_check_branch
          %151 = sbr.rel (%p149) target = $region16
        $region15: #{linear_pallas.1} parent=11 // pred_region
          %s152 = smul.u32 2, %s25
          %s154 = ssub.s32 256, 256
          %155 = vsyncadd [#allocation3], %s154
          %s156 = smul.addr %s152, 128
          %s157 = scalar_lea.hbm %s0, %s156
          %s158 = sshll.u32 [#allocation2], 4
          %s159 = int_to_ptr.vmem [resolvable:$true] %s158
          %164 = dma.hbm_to_vmem [thread:$0]  %s157, 256, %s159, [#allocation3], 128, 128, 8
        $region16: #{linear_pallas.1} parent=11 // pred_fallthru
          _
      $region12: #{linear_pallas.1} parent=5 // pred_fallthru
        _
      %p165 = scmp.lt.s32.totalorder %s16, 2
      // Predicated region
      $region17: #{linear_pallas.1} parent=5 // pred_check
        %p166 = pneg %p165
      $region18: #{linear_pallas.1} parent=5 // pred_check_branch
        %168 = sbr.rel (%p166) target = $region20
      $region19: #{linear_pallas.1} parent=5 // pred_region
        // Predicated region
        $region21: #{linear_pallas.1} parent=19 // pred_check
          %p169 = pneg %p74
        $region22: #{linear_pallas.1} parent=19 // pred_check_branch
          %171 = sbr.rel (%p169) target = $region24
        $region23: #{linear_pallas.1} parent=19 // pred_region
          %s172 = sand.u32 %s64, 1
          %s173 = scalar_lea.sflag [#allocation6], %s172
          %s174 = sand.u32 %s64, 1
          %s175 = smul.addr %s174, 128
          %s176 = scalar_lea.vmem [#allocation5], %s175
          %s177 = smul.u32 16, %s24
          %s179 = ssub.s32 2048, 2048
          %180 = vsyncadd %s173, %s179
          %s181 = smul.addr %s177, 128
          %s182 = scalar_lea.hbm %s1, %s181
          %s183 = sshll.u32 %s176, 4
          %s184 = int_to_ptr.vmem [resolvable:$true] %s183
          %189 = dma.hbm_to_vmem [thread:$0]  %s182, 2048, %s184, %s173, 128, 128, 8
        $region24: #{linear_pallas.1} parent=19 // pred_fallthru
          _
        // Predicated region
        $region25: #{linear_pallas.1} parent=19 // pred_check
          %p190 = pneg %p100
        $region26: #{linear_pallas.1} parent=19 // pred_check_branch
          %192 = sbr.rel (%p190) target = $region28
        $region27: #{linear_pallas.1} parent=19 // pred_region
          %p193 = scmp.lt.s32.totalorder %s24, 1
          %s194 = scalar_select %p193, %s24, 1
          %s195 = scalar_lea.vmem %s2, %s194
        $region28: #{linear_pallas.1} parent=19 // pred_fallthru
          _
      $region20: #{linear_pallas.1} parent=5 // pred_fallthru
        _
      %p196 = scmp.le.s32.totalorder 1, %s16
      %p197 = scmp.lt.s32.totalorder %s16, 3
      %p198 = pnand %p196, %p197
      %p199 = pneg %p198
      // Predicated region
      $region29: #{linear_pallas.1} parent=5 // pred_check
        _
      $region30: #{linear_pallas.1} parent=5 // pred_check_branch
        %201 = sbr.rel (%p198) target = $region32
      $region31: #{linear_pallas.1} parent=5 // pred_region
        %s202 = ssub.s32 %s16, 1
        // Predicated region
        $region33: #{linear_pallas.1} parent=31 // pred_check
          %p203 = pneg %p54
        $region34: #{linear_pallas.1} parent=31 // pred_check_branch
          %205 = sbr.rel (%p203) target = $region36
        $region35: #{linear_pallas.1} parent=31 // pred_region
          %206 = dma.done [#allocation3], 256
        $region36: #{linear_pallas.1} parent=31 // pred_fallthru
          _
        %s207 = sand.u32 %s67, 1
        %s208 = scalar_lea.sflag [#allocation6], %s207
        %s209 = sand.u32 %s67, 1
        %s210 = smul.addr %s209, 128
        %s211 = scalar_lea.vmem [#allocation5], %s210
        // Predicated region
        $region37: #{linear_pallas.1} parent=31 // pred_check
          %p212 = pneg %p80
        $region38: #{linear_pallas.1} parent=31 // pred_check_branch
          %214 = sbr.rel (%p212) target = $region40
        $region39: #{linear_pallas.1} parent=31 // pred_region
          %215 = dma.done %s208, 2048
        $region40: #{linear_pallas.1} parent=31 // pred_fallthru
          _
        %p216 = pneg %p54
        %p217 = pneg %p51
        %s218 = sand.u32 %s67, 1
        %s219 = scalar_lea.sflag [#allocation6], %s218
        %s220 = sand.u32 %s67, 1
        %s221 = smul.addr %s220, 128
        %s222 = scalar_lea.vmem [#allocation5], %s221
        %p223 = pneg %p80
        %p224 = pneg %p77
        %p225 = scmp.lt.s32.totalorder %s26, 1
        %s226 = scalar_select %p225, %s26, 1
        %s227 = scalar_lea.vmem %s2, %s226
        %p228 = pneg %p106
        %p229 = pneg %p103
        %p230 = pneg %p134
        %p231 = pneg %p131
        %s232 = sand.u32 %s121, 1
        %s233 = scalar_lea.sflag [#allocation4], %s232
        %s234 = sand.u32 %s121, 1
        %s235 = smul.addr %s234, 16
        %s236 = scalar_lea.vmem [#allocation7], %s235
        %s237 = smul.u32 2, %s25
        %s238 = smul.u32 16, %s26
        %p239 = scmp.lt.s32.totalorder %s26, 1
        %s240 = scalar_select %p239, %s26, 1
        %s241 = scalar_lea.vmem %s2, %s240
        %s242 = smul.u32 2, %s25
        %v243 = vld [vmem:[#allocation2] sm:$0xff]
        %v244 = vld [vmem:[#allocation2 + $0x8] sm:$0xff]
        %v245 = vld [vmem:[%s211] sm:$0xff]
        %v246 = vld [vmem:[%s211 + $0x8] sm:$0xff]
        %v247 = vld [vmem:[%s211 + $0x10] sm:$0xff]
        %v248 = vld [vmem:[%s211 + $0x18] sm:$0xff]
        %v249 = vld [vmem:[%s211 + $0x20] sm:$0xff]
        %v250 = vld [vmem:[%s211 + $0x28] sm:$0xff]
        %v251 = vld [vmem:[%s211 + $0x30] sm:$0xff]
        %v252 = vld [vmem:[%s211 + $0x38] sm:$0xff]
        %v253 = vld [vmem:[%s211 + $0x40] sm:$0xff]
        %v254 = vld [vmem:[%s211 + $0x48] sm:$0xff]
        %v255 = vld [vmem:[%s211 + $0x50] sm:$0xff]
        %v256 = vld [vmem:[%s211 + $0x58] sm:$0xff]
        %v257 = vld [vmem:[%s211 + $0x60] sm:$0xff]
        %v258 = vld [vmem:[%s211 + $0x68] sm:$0xff]
        %v259 = vld [vmem:[%s211 + $0x70] sm:$0xff]
        %v260 = vld [vmem:[%s211 + $0x78] sm:$0xff]
        %v261 = vld [vmem:[%s241] sm:$0x1]
        %v263 = vlaneseq
        %v264 = vshrl.u32 %v263, 7
        %v265 = vsub.s32 0, %v264
        %v266 = vrot.slane %v261, %v265
        %268 = vmatprep.subr.mxu0 0.0
        %269 = vmatpush1.xpose.msra.mxu0 %v245
        %270 = vmatprep.subr.mxu0 0.0
        %271 = vmatpush1.xpose.msra.mxu0 %v246
        %272 = vmatprep.subr.mxu0 0.0
        %273 = vmatpush1.xpose.msra.mxu0 %v247
        %274 = vmatprep.subr.mxu0 0.0
        %275 = vmatpush1.xpose.msra.mxu0 %v248
        %276 = vmatprep.subr.mxu0 0.0
        %277 = vmatpush1.xpose.msra.mxu0 %v249
        %278 = vmatprep.subr.mxu0 0.0
        %279 = vmatpush1.xpose.msra.mxu0 %v250
        %280 = vmatprep.subr.mxu0 0.0
        %281 = vmatpush1.xpose.msra.mxu0 %v251
        %282 = vmatprep.subr.mxu0 0.0
        %283 = vmatpush1.xpose.msra.mxu0 %v252
        %284 = vmatprep.subr.mxu0 0.0
        %285 = vmatpush1.xpose.msra.mxu0 %v253
        %286 = vmatprep.subr.mxu0 0.0
        %287 = vmatpush1.xpose.msra.mxu0 %v254
        %288 = vmatprep.subr.mxu0 0.0
        %289 = vmatpush1.xpose.msra.mxu0 %v255
        %290 = vmatprep.subr.mxu0 0.0
        %291 = vmatpush1.xpose.msra.mxu0 %v256
        %292 = vmatprep.subr.mxu0 0.0
        %293 = vmatpush1.xpose.msra.mxu0 %v257
        %294 = vmatprep.subr.mxu0 0.0
        %295 = vmatpush1.xpose.msra.mxu0 %v258
        %296 = vmatprep.subr.mxu0 0.0
        %297 = vmatpush1.xpose.msra.mxu0 %v259
        %298 = vmatprep.subr.mxu0 0.0
        %299 = vmatpush1.xpose.msra.mxu0 %v260
        %300 = vmatprep.subr.mxu0 0.0
        %301 = vmatpush1.xpose.msra.mxu0 0.0
        %302 = vmatprep.subr.mxu0 0.0
        %303 = vmatpush1.xpose.msra.mxu0 0.0
        %304 = vmatprep.subr.mxu0 0.0
        %305 = vmatpush1.xpose.msra.mxu0 0.0
        %306 = vmatprep.subr.mxu0 0.0
        %307 = vmatpush1.xpose.msra.mxu0 0.0
        %308 = vmatprep.subr.mxu0 0.0
        %309 = vmatpush1.xpose.msra.mxu0 0.0
        %310 = vmatprep.subr.mxu0 0.0
        %311 = vmatpush1.xpose.msra.mxu0 0.0
        %312 = vmatprep.subr.mxu0 0.0
        %313 = vmatpush1.xpose.msra.mxu0 0.0
        %314 = vmatprep.subr.mxu0 0.0
        %315 = vmatpush1.xpose.msra.mxu0 0.0
        %316 = vmatprep.subr.mxu0 0.0
        %317 = vmatpush1.xpose.msra.mxu0 0.0
        %318 = vmatprep.subr.mxu0 0.0
        %319 = vmatpush1.xpose.msra.mxu0 0.0
        %320 = vmatprep.subr.mxu0 0.0
        %321 = vmatpush1.xpose.msra.mxu0 0.0
        %322 = vmatprep.subr.mxu0 0.0
        %323 = vmatpush1.xpose.msra.mxu0 0.0
        %324 = vmatprep.subr.mxu0 0.0
        %325 = vmatpush1.xpose.msra.mxu0 0.0
        %326 = vmatprep.subr.mxu0 0.0
        %327 = vmatpush1.xpose.msra.mxu0 0.0
        %328 = vmatprep.subr.mxu0 0.0
        %329 = vmatpush1.xpose.msra.mxu0 0.0
        %330 = vmatprep.subr.mxu0 0.0
        %331 = vmatpush1.xpose.msra.mxu0 0.0
        %332 = vmatprep.mubr.f32.mxu0 0.0
        %333 = vmatmul.mubr.f32.gmra.mrb[0].mxu0 %v243
        %v334 = vpop.f32.mrb[0].mxu0
        %v335 = vadd.f32 %v266, %v334
        %v336 = vpop.f32.mrb[0].mxu0
        %337 = vmatprep.mubr.f32.mxu0 0.0
        %338 = vmatmul.mubr.f32.gmra.mrb[0].mxu0 %v244
        %v339 = vpop.f32.mrb[0].mxu0
        %v340 = vadd.f32 %v266, %v339
        %v341 = vpop.f32.mrb[0].mxu0
        %342 = vdwg.mxu0
        %343 = vst [vmem:[%s236] sm:$0xff] %v335
        %344 = vst [vmem:[%s236 + $0x8] sm:$0xff] %v340
        %s345 = sand.u32 %s121, 1
        %s346 = scalar_lea.sflag [#allocation4], %s345
        %s347 = sand.u32 %s121, 1
        %s348 = smul.addr %s347, 16
        %s349 = scalar_lea.vmem [#allocation7], %s348
        // Predicated region
        $region41: #{linear_pallas.1} parent=31 // pred_check
          %p350 = pneg %p131
        $region42: #{linear_pallas.1} parent=31 // pred_check_branch
          %352 = sbr.rel (%p350) target = $region44
        $region43: #{linear_pallas.1} parent=31 // pred_region
          %s353 = smul.u32 2, %s25
          %s355 = ssub.s32 256, 256
          %356 = vsyncadd %s346, %s355
          %s357 = smul.addr %s353, 2
          %s358 = sadd.s32 %s26, %s357
          %s359 = smul.addr %s358, 128
          %s360 = scalar_lea.hbm %s3, %s359
          %s361 = sshll.u32 %s349, 4
          %s362 = int_to_ptr.vmem [resolvable:$true] %s361
          %367 = dma.vmem_to_hbm [thread:$0]  %s362, 256, %s360, %s346, 128, 256, 8
        $region44: #{linear_pallas.1} parent=31 // pred_fallthru
          _
      $region32: #{linear_pallas.1} parent=5 // pred_fallthru
        _
      %p368 = scmp.le.s32.totalorder 2, %s16
      // Predicated region
      $region45: #{linear_pallas.1} parent=5 // pred_check
        %p369 = pneg %p368
      $region46: #{linear_pallas.1} parent=5 // pred_check_branch
        %371 = sbr.rel (%p369) target = $region48
      $region47: #{linear_pallas.1} parent=5 // pred_region
        %s372 = ssub.s32 %s16, 2
        // Predicated region
        $region49: #{linear_pallas.1} parent=47 // pred_check
          %p373 = pneg %p137
        $region50: #{linear_pallas.1} parent=47 // pred_check_branch
          %375 = sbr.rel (%p373) target = $region52
        $region51: #{linear_pallas.1} parent=47 // pred_region
          %s376 = sand.u32 %s122, 1
          %s377 = scalar_lea.sflag [#allocation4], %s376
          %s378 = sand.u32 %s122, 1
          %s379 = smul.addr %s378, 16
          %s380 = scalar_lea.vmem [#allocation7], %s379
          %381 = dma.done %s377, 256
        $region52: #{linear_pallas.1} parent=47 // pred_fallthru
          _
      $region48: #{linear_pallas.1} parent=5 // pred_fallthru
        _
    $region6: #{linear_pallas.1} parent=1 // loop_footer
      %s20 = sadd.s32 1, %s16
    $region7: #{linear_pallas.1} parent=1 // loop_footer_branch
      %15 = sbr.rel target = $region3
    $region8: #{linear_pallas.1} parent=1 // loop_exit
      _
    %382 = vsyncpa [#allocation3], 1
    %s383 = scalar_lea.sflag [#allocation3], 1
    %384 = vsyncpa %s383, 1
    %385 = vsyncpa [#allocation6], 1
    %s386 = scalar_lea.sflag [#allocation6], 1
    %387 = vsyncpa %s386, 1
    %388 = vsyncpa [#allocation4], 1
    %s389 = scalar_lea.sflag [#allocation4], 1
    %390 = vsyncpa %s389, 1

</llo_original>
